<compile_context>
chip_gen: v7x
topology: tpu7x:2x2x1
jax: 0.10.0
libtpu: 0.0.40
codegen_flags: <defaults>
</compile_context>

<pallas_src>
import functools

import jax
import jax.numpy as jnp
from jax.experimental import pallas as pl
from jax.experimental.pallas import tpu as pltpu

_LANE = 128


def _fused_lora_mlp_kernel(*refs, n_layers, fold_lora):
    """Whole LoRA-MLP forward for one batch tile, all layers fused.

    refs = (x_ref, per-layer operands..., o_ref), where per-layer operands are
      fold_lora=True : wT (in, out) bf16, b (1, out) f32
      fold_lora=False: waT (in, out+r) bf16, b (1, out) f32, bT (r, out) bf16
    Activations never leave VMEM/vregs between layers.
    """
    x_ref = refs[0]
    o_ref = refs[-1]
    per = 2 if fold_lora else 3

    h = x_ref[...]                                           # f32 (bm, in)
    for idx in range(n_layers):
        layer_refs = refs[1 + per * idx: 1 + per * (idx + 1)]
        wT_ref, b_ref = layer_refs[0], layer_refs[1]
        out = b_ref.shape[1]

        # Canonical (M,K)x(K,N) bf16 matmul with f32 accumulation on the MXU.
        t = jnp.dot(h.astype(jnp.bfloat16), wT_ref[...],
                    preferred_element_type=jnp.float32)

        if fold_lora:
            y = t + b_ref[...]
        else:
            # Stacked operand: first `out` columns are the base projection,
            # trailing r columns are x @ A.T (LoRA scaling folded into B).
            y = t[:, :out] + b_ref[...]
            xa = t[:, out:].astype(jnp.bfloat16)             # (bm, r)
            y = y + jnp.dot(xa, layer_refs[2][...],
                            preferred_element_type=jnp.float32)

        if idx != n_layers - 1:
            y = jnp.maximum(y, 0.0)      # fused ReLU; dropout = eval-mode identity
        h = y

    o_ref[...] = h.astype(o_ref.dtype)


def _preprocess_params(params, *, lora_rank, lora_alpha, fold_lora, out_pad):
    """Fold/stack + pad + transpose + bf16-cast per-layer operands (wrapper-side)."""
    scaling = lora_alpha / lora_rank
    n_layers = len(params)
    flat = []
    for idx, (w, b, a, bb) in enumerate(params):
        last = idx == n_layers - 1
        b2d = b.reshape(1, -1).astype(jnp.float32)
        if fold_lora:
            w_eff = w + scaling * (bb @ a)                   # exact fold in f32
            if last and w_eff.shape[0] != out_pad:
                pad = out_pad - w_eff.shape[0]
                w_eff = jnp.pad(w_eff, ((0, pad), (0, 0)))   # zero rows -> zero outputs
                b2d = jnp.pad(b2d, ((0, 0), (0, pad)))
            flat += [w_eff.T.astype(jnp.bfloat16), b2d]
        else:
            bbs = bb * scaling                               # fold scaling into B
            if last and w.shape[0] != out_pad:
                pad = out_pad - w.shape[0]
                w = jnp.pad(w, ((0, pad), (0, 0)))
                b2d = jnp.pad(b2d, ((0, 0), (0, pad)))
                bbs = jnp.pad(bbs, ((0, pad), (0, 0)))
            wa = jnp.concatenate([w, a], axis=0)             # (out+r, in)
            flat += [wa.T.astype(jnp.bfloat16), b2d, bbs.T.astype(jnp.bfloat16)]
    return flat


def lora_mlp_forward(x, params, *, lora_rank, lora_alpha=1.0, fold_lora=True,
                     batch_tile=128):
    """Fused LoRA-MLP forward (eval mode)."""
    n_layers = len(params)
    batch, in_features = x.shape
    num_classes = params[-1][0].shape[0]
    out_pad = max(_LANE, -(-num_classes // _LANE) * _LANE)

    # Batch tiling: leading "parallel" grid axis (megacore / v7x two TCs).
    bpad = -(-batch // 8) * 8                       # sublane-align f32 rows
    if bpad > batch_tile:
        bm = batch_tile
        bpad = -(-bpad // bm) * bm
    else:
        bm = bpad
    xp = x if bpad == batch else jnp.pad(x, ((0, bpad - batch), (0, 0)))
    grid = (bpad // bm,)

    flat_params = _preprocess_params(
        params, lora_rank=lora_rank, lora_alpha=lora_alpha,
        fold_lora=fold_lora, out_pad=out_pad)
    flat_inputs = [xp] + flat_params

    # x / out walk the batch grid axis; weights are full-extent revisited blocks.
    in_specs = [pl.BlockSpec((bm, in_features), lambda i: (i, 0))]
    in_specs += [pl.BlockSpec(arr.shape, lambda i: (0, 0)) for arr in flat_params]
    out_specs = pl.BlockSpec((bm, out_pad), lambda i: (i, 0))

    # Byte/flop accounting -> CostEstimate + explicit scoped-VMEM limit.
    out_bytes = bpad * out_pad * x.dtype.itemsize
    total_bytes = sum(int(a.size) * a.dtype.itemsize for a in flat_inputs) + out_bytes
    flops = 0
    for (w, _, _, _) in params:
        out_f, in_f = w.shape
        if fold_lora:
            flops += 2 * bpad * in_f * out_f
        else:
            flops += 2 * bpad * (in_f * (out_f + lora_rank) + lora_rank * out_f)
    # Generous (double-buffered operands + headroom), but capped below the
    # smallest physical VMEM (v7x: 64 MiB). Larger models need the tiled variant.
    vmem_limit = int(min(48 * 1024 * 1024,
                         max(16 * 1024 * 1024, 2 * total_bytes + (1 << 22))))

    kernel = functools.partial(_fused_lora_mlp_kernel,
                               n_layers=n_layers, fold_lora=fold_lora)

    out_padded = pl.pallas_call(
        kernel,
        out_shape=jax.ShapeDtypeStruct((bpad, out_pad), x.dtype),
        grid=grid,
        in_specs=in_specs,
        out_specs=out_specs,
        compiler_params=pltpu.CompilerParams(
            dimension_semantics=("parallel",),
            vmem_limit_bytes=vmem_limit),
        cost_estimate=pl.CostEstimate(
            flops=int(flops), transcendentals=0, bytes_accessed=int(total_bytes)),
    )(*flat_inputs)

    return out_padded[:batch, :num_classes]


def init_lora_mlp_params(key, *, num_classes, input_size, hidden_size,
                         hidden_layers, lora_rank):
    """Deterministic synthetic parameter init (shapes match the PyTorch module)."""
    params = []
    dims = [(input_size, hidden_size)] + \
           [(hidden_size, hidden_size)] * (hidden_layers - 1) + \
           [(hidden_size, num_classes)]
    for (fan_in, fan_out) in dims:
        key, kw, kb, ka, kbb = jax.random.split(key, 5)
        scale = 1.0 / jnp.sqrt(fan_in)
        w = jax.random.uniform(kw, (fan_out, fan_in), jnp.float32, -scale, scale)
        b = jax.random.uniform(kb, (fan_out,), jnp.float32, -scale, scale)
        a = jax.random.normal(ka, (lora_rank, fan_in), jnp.float32) * 0.01
        # loralib zero-inits B; use small nonzero values so the LoRA path matters.
        bb = jax.random.normal(kbb, (fan_out, lora_rank), jnp.float32) * 0.01
        params.append((w, b, a, bb))
    return params


def lora_mlp_forward_ref(x, params, *, lora_rank, lora_alpha=1.0):
    """Plain-JAX f32 reference implementing the PyTorch module's forward."""
    scaling = lora_alpha / lora_rank
    n_layers = len(params)
    h = x
    for idx, (w, b, a, bb) in enumerate(params):
        y = h @ w.T + b + (h @ a.T) @ bb.T * scaling
        if idx != n_layers - 1:
            y = jnp.maximum(y, 0.0)
        h = y
    return h


def lora_mlp_forward_quantized_ref(x, params, *, lora_rank, lora_alpha=1.0,
                                   fold_lora=True):
    """Plain-JAX reference on the SAME bf16-cast operands the kernel consumes."""
    n_layers = len(params)
    num_classes = params[-1][0].shape[0]
    out_pad = max(_LANE, -(-num_classes // _LANE) * _LANE)
    flat = _preprocess_params(params, lora_rank=lora_rank, lora_alpha=lora_alpha,
                              fold_lora=fold_lora, out_pad=out_pad)
    per = 2 if fold_lora else 3
    h = x.astype(jnp.float32)
    for idx in range(n_layers):
        ops = flat[per * idx: per * (idx + 1)]
        wT = ops[0].astype(jnp.float32)
        b = ops[1]
        t = h.astype(jnp.bfloat16).astype(jnp.float32) @ wT
        out = b.shape[1]
        if fold_lora:
            y = t + b
        else:
            xa = t[:, out:].astype(jnp.bfloat16).astype(jnp.float32)
            y = t[:, :out] + b + xa @ ops[2].astype(jnp.float32)
        if idx != n_layers - 1:
            y = jnp.maximum(y, 0.0)
        h = y
    return h[:, :num_classes]


if __name__ == "__main__":
    # Small, module-consistent shapes (sublane/lane friendly).
    input_size = 256
    hidden_size = 128
    hidden_layers = 2
    num_classes = 2
    lora_rank = 16

    key = jax.random.PRNGKey(0)
    key, kx1, kx2 = jax.random.split(key, 3)
    params = init_lora_mlp_params(
        key, num_classes=num_classes, input_size=input_size,
        hidden_size=hidden_size, hidden_layers=hidden_layers,
        lora_rank=lora_rank)

    x_small = jax.random.normal(kx1, (8, input_size), jnp.float32)
    x_large = jax.random.normal(kx2, (192, input_size), jnp.float32)  # multi-tile grid

    # Exercise: folded path, stacked (separate-adapter) path, and a batch big
    # enough to span two "parallel" grid steps (with batch padding/slicing).
    for x, fold in ((x_small, True), (x_small, False), (x_large, True)):
        out = lora_mlp_forward(x, params, lora_rank=lora_rank, fold_lora=fold)
        out = jax.block_until_ready(out)
        assert out.shape == (x.shape[0], num_classes), out.shape

        # Tight check vs. a reference using the identical bf16 operands.
        ref_q = lora_mlp_forward_quantized_ref(
            x, params, lora_rank=lora_rank, fold_lora=fold)
        assert jnp.allclose(out, ref_q, atol=2e-3, rtol=2e-3), \
            "mismatch vs bf16-operand reference"

        # Loose check vs. the pure-f32 module semantics (bf16 quantization only).
        ref_f32 = lora_mlp_forward_ref(x, params, lora_rank=lora_rank)
        assert jnp.allclose(out, ref_f32, atol=5e-2, rtol=5e-2), \
            "mismatch vs f32 module reference beyond quantization error"

    print("KERNEL_OK")
</pallas_src>

<mosaic_0001>
module attributes {stable_mosaic.version = 11 : i64} {
  func.func @_fused_lora_mlp_kernel(%arg0: i32, %arg1: memref<8x256xf32, #tpu.memory_space<vmem>>, %arg2: memref<256x128xbf16, #tpu.memory_space<vmem>>, %arg3: memref<1x128xf32, #tpu.memory_space<vmem>>, %arg4: memref<128x128xbf16, #tpu.memory_space<vmem>>, %arg5: memref<1x128xf32, #tpu.memory_space<vmem>>, %arg6: memref<128x128xbf16, #tpu.memory_space<vmem>>, %arg7: memref<1x128xf32, #tpu.memory_space<vmem>>, %arg8: memref<8x128xf32, #tpu.memory_space<vmem>>) attributes {dimension_semantics = [#tpu.dimension_semantics<parallel>], iteration_bounds = array<i64: 1>, scalar_prefetch = 0 : i64, scratch_operands = 0 : i64, tpu.core_type = #tpu.core_type<tc>, window_params = [{transform_indices = @transform_0, window_bounds = array<i64: 8, 256>}, {pipeline_mode = #tpu.pipeline_mode<synchronous>, transform_indices = @transform_1, window_bounds = array<i64: 256, 128>}, {pipeline_mode = #tpu.pipeline_mode<synchronous>, transform_indices = @transform_2, window_bounds = array<i64: 1, 128>}, {pipeline_mode = #tpu.pipeline_mode<synchronous>, transform_indices = @transform_3, window_bounds = array<i64: 128, 128>}, {pipeline_mode = #tpu.pipeline_mode<synchronous>, transform_indices = @transform_4, window_bounds = array<i64: 1, 128>}, {pipeline_mode = #tpu.pipeline_mode<synchronous>, transform_indices = @transform_5, window_bounds = array<i64: 128, 128>}, {pipeline_mode = #tpu.pipeline_mode<synchronous>, transform_indices = @transform_6, window_bounds = array<i64: 1, 128>}, {transform_indices = @transform_7, window_bounds = array<i64: 8, 128>}]} {
    %c0 = arith.constant 0 : index
    %c0_0 = arith.constant 0 : index
    %0 = vector.load %arg1[%c0, %c0_0] : memref<8x256xf32, #tpu.memory_space<vmem>>, vector<8x256xf32>
    %1 = arith.truncf %0 : vector<8x256xf32> to vector<8x256xbf16>
    %c0_1 = arith.constant 0 : index
    %c0_2 = arith.constant 0 : index
    %2 = vector.load %arg2[%c0_1, %c0_2] : memref<256x128xbf16, #tpu.memory_space<vmem>>, vector<256x128xbf16>
    %cst = arith.constant dense<0.000000e+00> : vector<8x128xf32>
    %3 = tpu.matmul %1, %2, %cst {dimension_numbers = #tpu.dot_dimension_numbers<[1], [0], [0], [1], [0, 0, 1, 1], [], []>} : vector<8x256xbf16>, vector<256x128xbf16>, vector<8x128xf32> -> vector<8x128xf32>
    %c0_3 = arith.constant 0 : index
    %c0_4 = arith.constant 0 : index
    %4 = vector.load %arg3[%c0_3, %c0_4] : memref<1x128xf32, #tpu.memory_space<vmem>>, vector<1x128xf32>
    %5 = vector.broadcast %4 : vector<1x128xf32> to vector<8x128xf32>
    %6 = arith.addf %3, %5 : vector<8x128xf32>
    %cst_5 = arith.constant 0.000000e+00 : f32
    %7 = vector.broadcast %cst_5 : f32 to vector<8x128xf32>
    %8 = arith.maximumf %6, %7 : vector<8x128xf32>
    %9 = arith.truncf %8 : vector<8x128xf32> to vector<8x128xbf16>
    %c0_6 = arith.constant 0 : index
    %c0_7 = arith.constant 0 : index
    %10 = vector.load %arg4[%c0_6, %c0_7] : memref<128x128xbf16, #tpu.memory_space<vmem>>, vector<128x128xbf16>
    %cst_8 = arith.constant dense<0.000000e+00> : vector<8x128xf32>
    %11 = tpu.matmul %9, %10, %cst_8 {dimension_numbers = #tpu.dot_dimension_numbers<[1], [0], [0], [1], [0, 0, 1, 1], [], []>} : vector<8x128xbf16>, vector<128x128xbf16>, vector<8x128xf32> -> vector<8x128xf32>
    %c0_9 = arith.constant 0 : index
    %c0_10 = arith.constant 0 : index
    %12 = vector.load %arg5[%c0_9, %c0_10] : memref<1x128xf32, #tpu.memory_space<vmem>>, vector<1x128xf32>
    %13 = vector.broadcast %12 : vector<1x128xf32> to vector<8x128xf32>
    %14 = arith.addf %11, %13 : vector<8x128xf32>
    %cst_11 = arith.constant 0.000000e+00 : f32
    %15 = vector.broadcast %cst_11 : f32 to vector<8x128xf32>
    %16 = arith.maximumf %14, %15 : vector<8x128xf32>
    %17 = arith.truncf %16 : vector<8x128xf32> to vector<8x128xbf16>
    %c0_12 = arith.constant 0 : index
    %c0_13 = arith.constant 0 : index
    %18 = vector.load %arg6[%c0_12, %c0_13] : memref<128x128xbf16, #tpu.memory_space<vmem>>, vector<128x128xbf16>
    %cst_14 = arith.constant dense<0.000000e+00> : vector<8x128xf32>
    %19 = tpu.matmul %17, %18, %cst_14 {dimension_numbers = #tpu.dot_dimension_numbers<[1], [0], [0], [1], [0, 0, 1, 1], [], []>} : vector<8x128xbf16>, vector<128x128xbf16>, vector<8x128xf32> -> vector<8x128xf32>
    %c0_15 = arith.constant 0 : index
    %c0_16 = arith.constant 0 : index
    %20 = vector.load %arg7[%c0_15, %c0_16] : memref<1x128xf32, #tpu.memory_space<vmem>>, vector<1x128xf32>
    %21 = vector.broadcast %20 : vector<1x128xf32> to vector<8x128xf32>
    %22 = arith.addf %19, %21 : vector<8x128xf32>
    %c0_17 = arith.constant 0 : index
    %c0_18 = arith.constant 0 : index
    %23 = vector.load %arg8[%c0_17, %c0_18] : memref<8x128xf32, #tpu.memory_space<vmem>>, vector<8x128xf32>
    tpu.vector_store %arg8[%c0_17, %c0_18], %22 {strides = array<i32>} : memref<8x128xf32, #tpu.memory_space<vmem>>, vector<8x128xf32>,
    return
  }
  func.func @transform_0(%arg0: i32) -> (i32, i32) {
    %c0_i32 = arith.constant 0 : i32
    %c0_i32_0 = arith.constant 0 : i32
    return %arg0, %c0_i32 : i32, i32
  }
  func.func @transform_1(%arg0: i32) -> (i32, i32) {
    %c0_i32 = arith.constant 0 : i32
    %c0_i32_0 = arith.constant 0 : i32
    %c0_i32_1 = arith.constant 0 : i32
    return %c0_i32, %c0_i32_0 : i32, i32
  }
  func.func @transform_2(%arg0: i32) -> (i32, i32) {
    %c0_i32 = arith.constant 0 : i32
    %c0_i32_0 = arith.constant 0 : i32
    %c0_i32_1 = arith.constant 0 : i32
    return %c0_i32, %c0_i32_0 : i32, i32
  }
  func.func @transform_3(%arg0: i32) -> (i32, i32) {
    %c0_i32 = arith.constant 0 : i32
    %c0_i32_0 = arith.constant 0 : i32
    %c0_i32_1 = arith.constant 0 : i32
    return %c0_i32, %c0_i32_0 : i32, i32
  }
  func.func @transform_4(%arg0: i32) -> (i32, i32) {
    %c0_i32 = arith.constant 0 : i32
    %c0_i32_0 = arith.constant 0 : i32
    %c0_i32_1 = arith.constant 0 : i32
    return %c0_i32, %c0_i32_0 : i32, i32
  }
  func.func @transform_5(%arg0: i32) -> (i32, i32) {
    %c0_i32 = arith.constant 0 : i32
    %c0_i32_0 = arith.constant 0 : i32
    %c0_i32_1 = arith.constant 0 : i32
    return %c0_i32, %c0_i32_0 : i32, i32
  }
  func.func @transform_6(%arg0: i32) -> (i32, i32) {
    %c0_i32 = arith.constant 0 : i32
    %c0_i32_0 = arith.constant 0 : i32
    %c0_i32_1 = arith.constant 0 : i32
    return %c0_i32, %c0_i32_0 : i32, i32
  }
  func.func @transform_7(%arg0: i32) -> (i32, i32) {
    %c0_i32 = arith.constant 0 : i32
    %c0_i32_0 = arith.constant 0 : i32
    return %arg0, %c0_i32 : i32, i32
  }
}

</mosaic_0001>

<llo_original>
// kernel: tpu_custom_call.1
$region0: #{tpu_custom_call.1}
  #allocation0 [shape = 'u32[]', space=smem, size = 0x4, offset = 0x4, fixed_abs, tag = 'smem constant byte address 0x4 - core index']
  #allocation1 [shape = 'u32[144,128]{1,0:T(1,128)}', space=vmem, size = 0x12000, scoped, tag = 'internal scratch']
  %s0 = inlined_call_operand.hbm [shape: f32[8,256], index: 0, kind: input, shape index: {}]
  %s1 = inlined_call_operand.hbm [shape: bf16[256,128], index: 1, kind: input, shape index: {}]
  %s2 = inlined_call_operand.vmem [shape: f32[1,128], index: 2, kind: input, shape index: {}]
  %s3 = inlined_call_operand.hbm [shape: bf16[128,128], index: 3, kind: input, shape index: {}]
  %s4 = inlined_call_operand.vmem [shape: f32[1,128], index: 4, kind: input, shape index: {}]
  %s5 = inlined_call_operand.hbm [shape: bf16[128,128], index: 5, kind: input, shape index: {}]
  %s6 = inlined_call_operand.vmem [shape: f32[1,128], index: 6, kind: input, shape index: {}]
  %s7 = inlined_call_operand.hbm [shape: f32[8,128], index: 7, kind: output, shape index: {}]
  %s8 = sld [smem:[#allocation0]]
  $region54: #{tpu_custom_call.1} parent=0
    _
  %s10 = ssub.s32 1, %s8
  %s11 = scalar_select 0, %s10, %s8
  $region1: #{tpu_custom_call.1} parent=0
    #allocation2 [shape = 'u8[8192]{0}', space=vmem, size = 0x2000, scoped, tag = 'input window, operand 0, single buffered']
    #allocation3 [shape = 's32[1]{0}', space=sflag, size = 0x4, scoped, tag = 'scoped memory for tpu_custom_call.1']
    #allocation4 [shape = 's32[1]{0}', space=sflag, size = 0x4, scoped, tag = 'scoped memory for tpu_custom_call.1']
    #allocation5 [shape = 'u8[65536]{0}', space=vmem, size = 0x10000, scoped, tag = 'input window, operand 1, single buffered']
    #allocation6 [shape = 's32[1]{0}', space=sflag, size = 0x4, scoped, tag = 'scoped memory for tpu_custom_call.1']
    #allocation7 [shape = 'u8[32768]{0}', space=vmem, size = 0x8000, scoped, tag = 'input window, operand 3, single buffered']
    #allocation8 [shape = 'u8[32768]{0}', space=vmem, size = 0x8000, scoped, tag = 'input window, operand 5, single buffered']
    #allocation9 [shape = 's32[1]{0}', space=sflag, size = 0x4, scoped, tag = 'scoped memory for tpu_custom_call.1']
    #allocation10 [shape = 'u8[4096]{0}', space=vmem, size = 0x1000, scoped, tag = 'output window, operand 0, single buffered']
    %12 = vsyncpa [#allocation3], 0
    %13 = vsyncpa [#allocation6], 0
    %14 = vsyncpa [#allocation9], 0
    %15 = vsyncpa [#allocation4], 0
    // Predicated region
    $region2: #{tpu_custom_call.1} parent=1 // pred_check
      _
    $region3: #{tpu_custom_call.1} parent=1 // pred_check_branch
      %17 = sbr.rel (0) target = $region5
    $region4: #{tpu_custom_call.1} parent=1 // pred_region
      %s19 = ssub.s32 256, 256
      %20 = vsyncadd [#allocation3], %s19
      %s22 = sshll.u32 [#allocation2], 4
      %s23 = int_to_ptr.vmem [resolvable:$true] %s22
      %25 = dma.hbm_to_vmem [thread:$0]  %s0, 256, %s23, [#allocation3]
    $region5: #{tpu_custom_call.1} parent=1 // pred_fallthru
      _
    // Predicated region
    $region6: #{tpu_custom_call.1} parent=1 // pred_check
      _
    $region7: #{tpu_custom_call.1} parent=1 // pred_check_branch
      %27 = sbr.rel (0) target = $region9
    $region8: #{tpu_custom_call.1} parent=1 // pred_region
      %s29 = ssub.s32 2048, 2048
      %30 = vsyncadd [#allocation6], %s29
      %s31 = sshll.u32 [#allocation5], 4
      %s32 = int_to_ptr.vmem [resolvable:$true] %s31
      %37 = dma.hbm_to_vmem [thread:$0]  %s1, 2048, %s32, [#allocation6], 64, 64, 4
    $region9: #{tpu_custom_call.1} parent=1 // pred_fallthru
      _
    // Predicated region
    $region10: #{tpu_custom_call.1} parent=1 // pred_check
      _
    $region11: #{tpu_custom_call.1} parent=1 // pred_check_branch
      %39 = sbr.rel (0) target = $region13
    $region12: #{tpu_custom_call.1} parent=1 // pred_region
      _
    $region13: #{tpu_custom_call.1} parent=1 // pred_fallthru
      _
    // Predicated region
    $region14: #{tpu_custom_call.1} parent=1 // pred_check
      _
    $region15: #{tpu_custom_call.1} parent=1 // pred_check_branch
      %41 = sbr.rel (0) target = $region17
    $region16: #{tpu_custom_call.1} parent=1 // pred_region
      %s43 = ssub.s32 1024, 1024
      %44 = vsyncadd [#allocation6], %s43
      %s45 = sshll.u32 [#allocation7], 4
      %s46 = int_to_ptr.vmem [resolvable:$true] %s45
      %51 = dma.hbm_to_vmem [thread:$0]  %s3, 1024, %s46, [#allocation6], 64, 64, 4
    $region17: #{tpu_custom_call.1} parent=1 // pred_fallthru
      _
    // Predicated region
    $region18: #{tpu_custom_call.1} parent=1 // pred_check
      _
    $region19: #{tpu_custom_call.1} parent=1 // pred_check_branch
      %53 = sbr.rel (0) target = $region21
    $region20: #{tpu_custom_call.1} parent=1 // pred_region
      _
    $region21: #{tpu_custom_call.1} parent=1 // pred_fallthru
      _
    // Predicated region
    $region22: #{tpu_custom_call.1} parent=1 // pred_check
      _
    $region23: #{tpu_custom_call.1} parent=1 // pred_check_branch
      %55 = sbr.rel (0) target = $region25
    $region24: #{tpu_custom_call.1} parent=1 // pred_region
      %s57 = ssub.s32 1024, 1024
      %58 = vsyncadd [#allocation9], %s57
      %s59 = sshll.u32 [#allocation8], 4
      %s60 = int_to_ptr.vmem [resolvable:$true] %s59
      %65 = dma.hbm_to_vmem [thread:$0]  %s5, 1024, %s60, [#allocation9], 64, 64, 4
    $region25: #{tpu_custom_call.1} parent=1 // pred_fallthru
      _
    // Predicated region
    $region26: #{tpu_custom_call.1} parent=1 // pred_check
      _
    $region27: #{tpu_custom_call.1} parent=1 // pred_check_branch
      %67 = sbr.rel (0) target = $region29
    $region28: #{tpu_custom_call.1} parent=1 // pred_region
      _
    $region29: #{tpu_custom_call.1} parent=1 // pred_fallthru
      _
    // Predicated region
    $region30: #{tpu_custom_call.1} parent=1 // pred_check
      _
    $region31: #{tpu_custom_call.1} parent=1 // pred_check_branch
      %69 = sbr.rel (0) target = $region33
    $region32: #{tpu_custom_call.1} parent=1 // pred_region
      %70 = dma.done [#allocation3], 256
    $region33: #{tpu_custom_call.1} parent=1 // pred_fallthru
      _
    // Predicated region
    $region34: #{tpu_custom_call.1} parent=1 // pred_check
      _
    $region35: #{tpu_custom_call.1} parent=1 // pred_check_branch
      %72 = sbr.rel (0) target = $region37
    $region36: #{tpu_custom_call.1} parent=1 // pred_region
      %73 = dma.done [#allocation6], 2048
    $region37: #{tpu_custom_call.1} parent=1 // pred_fallthru
      _
    // Predicated region
    $region38: #{tpu_custom_call.1} parent=1 // pred_check
      _
    $region39: #{tpu_custom_call.1} parent=1 // pred_check_branch
      %75 = sbr.rel (0) target = $region41
    $region40: #{tpu_custom_call.1} parent=1 // pred_region
      %76 = dma.done [#allocation6], 1024
    $region41: #{tpu_custom_call.1} parent=1 // pred_fallthru
      _
    // Predicated region
    $region42: #{tpu_custom_call.1} parent=1 // pred_check
      _
    $region43: #{tpu_custom_call.1} parent=1 // pred_check_branch
      %78 = sbr.rel (0) target = $region45
    $region44: #{tpu_custom_call.1} parent=1 // pred_region
      %79 = dma.done [#allocation9], 1024
    $region45: #{tpu_custom_call.1} parent=1 // pred_fallthru
      _
    %v81 = vld [vmem:[#allocation2] sm:$0xff]
    %v82 = vld [vmem:[#allocation2 + $0x8] sm:$0xff]
    %v83 = vpack.c.bf16 %v81, %v81
    %v84 = vpack.c.bf16 %v82, %v82
    %v85 = vld [vmem:[#allocation5] sm:$0xf]
    %v86 = vld [vmem:[#allocation5 + $0x4] sm:$0xf]
    %v87 = vld [vmem:[#allocation5 + $0x8] sm:$0xf]
    %v88 = vld [vmem:[#allocation5 + $0xc] sm:$0xf]
    %v89 = vld [vmem:[#allocation5 + $0x10] sm:$0xf]
    %v90 = vld [vmem:[#allocation5 + $0x14] sm:$0xf]
    %v91 = vld [vmem:[#allocation5 + $0x18] sm:$0xf]
    %v92 = vld [vmem:[#allocation5 + $0x1c] sm:$0xf]
    %v93 = vld [vmem:[#allocation5 + $0x20] sm:$0xf]
    %v94 = vld [vmem:[#allocation5 + $0x24] sm:$0xf]
    %v95 = vld [vmem:[#allocation5 + $0x28] sm:$0xf]
    %v96 = vld [vmem:[#allocation5 + $0x2c] sm:$0xf]
    %v97 = vld [vmem:[#allocation5 + $0x30] sm:$0xf]
    %v98 = vld [vmem:[#allocation5 + $0x34] sm:$0xf]
    %v99 = vld [vmem:[#allocation5 + $0x38] sm:$0xf]
    %v100 = vld [vmem:[#allocation5 + $0x3c] sm:$0xf]
    %v101 = vld [vmem:[#allocation5 + $0x40] sm:$0xf]
    %v102 = vld [vmem:[#allocation5 + $0x44] sm:$0xf]
    %v103 = vld [vmem:[#allocation5 + $0x48] sm:$0xf]
    %v104 = vld [vmem:[#allocation5 + $0x4c] sm:$0xf]
    %v105 = vld [vmem:[#allocation5 + $0x50] sm:$0xf]
    %v106 = vld [vmem:[#allocation5 + $0x54] sm:$0xf]
    %v107 = vld [vmem:[#allocation5 + $0x58] sm:$0xf]
    %v108 = vld [vmem:[#allocation5 + $0x5c] sm:$0xf]
    %v109 = vld [vmem:[#allocation5 + $0x60] sm:$0xf]
    %v110 = vld [vmem:[#allocation5 + $0x64] sm:$0xf]
    %v111 = vld [vmem:[#allocation5 + $0x68] sm:$0xf]
    %v112 = vld [vmem:[#allocation5 + $0x6c] sm:$0xf]
    %v113 = vld [vmem:[#allocation5 + $0x70] sm:$0xf]
    %v114 = vld [vmem:[#allocation5 + $0x74] sm:$0xf]
    %v115 = vld [vmem:[#allocation5 + $0x78] sm:$0xf]
    %v116 = vld [vmem:[#allocation5 + $0x7c] sm:$0xf]
    %v117 = vld [vmem:[%s2] sm:$0x1]
    %v119 = vlaneseq
    %v120 = vshrl.u32 %v119, 7
    %v121 = vsub.s32 0, %v120
    %v122 = vrot.slane %v117, %v121
    %v156 = vunpack.c.l.b16 %v85
    %v157 = vunpack.c.l.b16 %v86
    %v158 = vunpack.c.l.b16 %v87
    %v159 = vunpack.c.l.b16 %v88
    %v160 = vunpack.c.l.b16 %v89
    %v161 = vunpack.c.l.b16 %v90
    %v162 = vunpack.c.l.b16 %v91
    %v163 = vunpack.c.l.b16 %v92
    %v164 = vunpack.c.l.b16 %v93
    %v165 = vunpack.c.l.b16 %v94
    %v166 = vunpack.c.l.b16 %v95
    %v167 = vunpack.c.l.b16 %v96
    %v168 = vunpack.c.l.b16 %v97
    %v169 = vunpack.c.l.b16 %v98
    %v170 = vunpack.c.l.b16 %v99
    %v171 = vunpack.c.l.b16 %v100
    %v172 = vunpack.c.l.b16 %v101
    %v173 = vunpack.c.l.b16 %v102
    %v174 = vunpack.c.l.b16 %v103
    %v175 = vunpack.c.l.b16 %v104
    %v176 = vunpack.c.l.b16 %v105
    %v177 = vunpack.c.l.b16 %v106
    %v178 = vunpack.c.l.b16 %v107
    %v179 = vunpack.c.l.b16 %v108
    %v180 = vunpack.c.l.b16 %v109
    %v181 = vunpack.c.l.b16 %v110
    %v182 = vunpack.c.l.b16 %v111
    %v183 = vunpack.c.l.b16 %v112
    %v184 = vunpack.c.l.b16 %v113
    %v185 = vunpack.c.l.b16 %v114
    %v186 = vunpack.c.l.b16 %v115
    %v187 = vunpack.c.l.b16 %v116
    %v188 = vpack.c.b16 %v157, %v156
    %v189 = vpack.c.b16 %v159, %v158
    %v190 = vpack.c.b16 %v161, %v160
    %v191 = vpack.c.b16 %v163, %v162
    %v192 = vpack.c.b16 %v165, %v164
    %v193 = vpack.c.b16 %v167, %v166
    %v194 = vpack.c.b16 %v169, %v168
    %v195 = vpack.c.b16 %v171, %v170
    %v196 = vpack.c.b16 %v173, %v172
    %v197 = vpack.c.b16 %v175, %v174
    %v198 = vpack.c.b16 %v177, %v176
    %v199 = vpack.c.b16 %v179, %v178
    %v200 = vpack.c.b16 %v181, %v180
    %v201 = vpack.c.b16 %v183, %v182
    %v202 = vpack.c.b16 %v185, %v184
    %v203 = vpack.c.b16 %v187, %v186
    %220 = vmatprep.subr.bf16.mxu0 0
    %221 = vmatpush1.bf16.msra.mxu0 %v188
    %222 = vmatprep.subr.bf16.mxu0 0
    %223 = vmatpush1.bf16.msra.mxu0 %v189
    %224 = vmatprep.subr.bf16.mxu0 0
    %225 = vmatpush1.bf16.msra.mxu0 %v190
    %226 = vmatprep.subr.bf16.mxu0 0
    %227 = vmatpush1.bf16.msra.mxu0 %v191
    %228 = vmatprep.subr.bf16.mxu0 0
    %229 = vmatpush1.bf16.msra.mxu0 %v192
    %230 = vmatprep.subr.bf16.mxu0 0
    %231 = vmatpush1.bf16.msra.mxu0 %v193
    %232 = vmatprep.subr.bf16.mxu0 0
    %233 = vmatpush1.bf16.msra.mxu0 %v194
    %234 = vmatprep.subr.bf16.mxu0 0
    %235 = vmatpush1.bf16.msra.mxu0 %v195
    %236 = vmatprep.subr.bf16.mxu0 0
    %237 = vmatpush1.bf16.msra.mxu0 %v196
    %238 = vmatprep.subr.bf16.mxu0 0
    %239 = vmatpush1.bf16.msra.mxu0 %v197
    %240 = vmatprep.subr.bf16.mxu0 0
    %241 = vmatpush1.bf16.msra.mxu0 %v198
    %242 = vmatprep.subr.bf16.mxu0 0
    %243 = vmatpush1.bf16.msra.mxu0 %v199
    %244 = vmatprep.subr.bf16.mxu0 0
    %245 = vmatpush1.bf16.msra.mxu0 %v200
    %246 = vmatprep.subr.bf16.mxu0 0
    %247 = vmatpush1.bf16.msra.mxu0 %v201
    %248 = vmatprep.subr.bf16.mxu0 0
    %249 = vmatpush1.bf16.msra.mxu0 %v202
    %250 = vmatprep.subr.bf16.mxu0 0
    %251 = vmatpush1.bf16.msra.mxu0 %v203
    %252 = vmatprep.mubr.bf16.mxu0 %v84
    %253 = vmatmul.mubr.bf16.gmra.mrb[0].mxu0 %v83
    %v254 = vpop.f32.mrb[0].mxu0
    %v255 = vadd.f32 %v122, %v254
    %v256 = vpop.f32.mrb[0].mxu0
    %v257 = vpop.f32.mrb[0].mxu0
    %v258 = vpop.f32.mrb[0].mxu0
    %259 = vdwg.mxu0
    %v260 = vmax.f32 %v255, 0.0
    %v261 = vpack.c.bf16 %v260, %v260
    %v262 = vld [vmem:[#allocation7] sm:$0xf]
    %v263 = vld [vmem:[#allocation7 + $0x4] sm:$0xf]
    %v264 = vld [vmem:[#allocation7 + $0x8] sm:$0xf]
    %v265 = vld [vmem:[#allocation7 + $0xc] sm:$0xf]
    %v266 = vld [vmem:[#allocation7 + $0x10] sm:$0xf]
    %v267 = vld [vmem:[#allocation7 + $0x14] sm:$0xf]
    %v268 = vld [vmem:[#allocation7 + $0x18] sm:$0xf]
    %v269 = vld [vmem:[#allocation7 + $0x1c] sm:$0xf]
    %v270 = vld [vmem:[#allocation7 + $0x20] sm:$0xf]
    %v271 = vld [vmem:[#allocation7 + $0x24] sm:$0xf]
    %v272 = vld [vmem:[#allocation7 + $0x28] sm:$0xf]
    %v273 = vld [vmem:[#allocation7 + $0x2c] sm:$0xf]
    %v274 = vld [vmem:[#allocation7 + $0x30] sm:$0xf]
    %v275 = vld [vmem:[#allocation7 + $0x34] sm:$0xf]
    %v276 = vld [vmem:[#allocation7 + $0x38] sm:$0xf]
    %v277 = vld [vmem:[#allocation7 + $0x3c] sm:$0xf]
    %v278 = vld [vmem:[%s4] sm:$0x1]
    %v280 = vlaneseq
    %v281 = vshrl.u32 %v280, 7
    %v282 = vsub.s32 0, %v281
    %v283 = vrot.slane %v278, %v282
    %v301 = vunpack.c.l.b16 %v262
    %v302 = vunpack.c.l.b16 %v263
    %v303 = vunpack.c.l.b16 %v264
    %v304 = vunpack.c.l.b16 %v265
    %v305 = vunpack.c.l.b16 %v266
    %v306 = vunpack.c.l.b16 %v267
    %v307 = vunpack.c.l.b16 %v268
    %v308 = vunpack.c.l.b16 %v269
    %v309 = vunpack.c.l.b16 %v270
    %v310 = vunpack.c.l.b16 %v271
    %v311 = vunpack.c.l.b16 %v272
    %v312 = vunpack.c.l.b16 %v273
    %v313 = vunpack.c.l.b16 %v274
    %v314 = vunpack.c.l.b16 %v275
    %v315 = vunpack.c.l.b16 %v276
    %v316 = vunpack.c.l.b16 %v277
    %v317 = vpack.c.b16 %v302, %v301
    %v318 = vpack.c.b16 %v304, %v303
    %v319 = vpack.c.b16 %v306, %v305
    %v320 = vpack.c.b16 %v308, %v307
    %v321 = vpack.c.b16 %v310, %v309
    %v322 = vpack.c.b16 %v312, %v311
    %v323 = vpack.c.b16 %v314, %v313
    %v324 = vpack.c.b16 %v316, %v315
    %333 = vmatprep.subr.bf16.mxu0 0
    %334 = vmatpush1.bf16.msra.mxu0 %v317
    %335 = vmatprep.subr.bf16.mxu0 0
    %336 = vmatpush1.bf16.msra.mxu0 %v318
    %337 = vmatprep.subr.bf16.mxu0 0
    %338 = vmatpush1.bf16.msra.mxu0 %v319
    %339 = vmatprep.subr.bf16.mxu0 0
    %340 = vmatpush1.bf16.msra.mxu0 %v320
    %341 = vmatprep.subr.bf16.mxu0 0
    %342 = vmatpush1.bf16.msra.mxu0 %v321
    %343 = vmatprep.subr.bf16.mxu0 0
    %344 = vmatpush1.bf16.msra.mxu0 %v322
    %345 = vmatprep.subr.bf16.mxu0 0
    %346 = vmatpush1.bf16.msra.mxu0 %v323
    %347 = vmatprep.subr.bf16.mxu0 0
    %348 = vmatpush1.bf16.msra.mxu0 %v324
    %349 = vmatprep.subr.bf16.mxu0 0
    %350 = vmatpush1.bf16.msra.mxu0 0
    %351 = vmatprep.subr.bf16.mxu0 0
    %352 = vmatpush1.bf16.msra.mxu0 0
    %353 = vmatprep.subr.bf16.mxu0 0
    %354 = vmatpush1.bf16.msra.mxu0 0
    %355 = vmatprep.subr.bf16.mxu0 0
    %356 = vmatpush1.bf16.msra.mxu0 0
    %357 = vmatprep.subr.bf16.mxu0 0
    %358 = vmatpush1.bf16.msra.mxu0 0
    %359 = vmatprep.subr.bf16.mxu0 0
    %360 = vmatpush1.bf16.msra.mxu0 0
    %361 = vmatprep.subr.bf16.mxu0 0
    %362 = vmatpush1.bf16.msra.mxu0 0
    %363 = vmatprep.subr.bf16.mxu0 0
    %364 = vmatpush1.bf16.msra.mxu0 0
    %365 = vmatprep.mubr.bf16.mxu0 0
    %366 = vmatmul.mubr.bf16.gmra.mrb[0].mxu0 %v261
    %v367 = vpop.f32.mrb[0].mxu0
    %v368 = vadd.f32 %v283, %v367
    %v369 = vpop.f32.mrb[0].mxu0
    %v370 = vpop.f32.mrb[0].mxu0
    %v371 = vpop.f32.mrb[0].mxu0
    %372 = vdwg.mxu0
    %v373 = vmax.f32 %v368, 0.0
    %v374 = vpack.c.bf16 %v373, %v373
    %v375 = vld [vmem:[#allocation8] sm:$0xf]
    %v376 = vld [vmem:[#allocation8 + $0x4] sm:$0xf]
    %v377 = vld [vmem:[#allocation8 + $0x8] sm:$0xf]
    %v378 = vld [vmem:[#allocation8 + $0xc] sm:$0xf]
    %v379 = vld [vmem:[#allocation8 + $0x10] sm:$0xf]
    %v380 = vld [vmem:[#allocation8 + $0x14] sm:$0xf]
    %v381 = vld [vmem:[#allocation8 + $0x18] sm:$0xf]
    %v382 = vld [vmem:[#allocation8 + $0x1c] sm:$0xf]
    %v383 = vld [vmem:[#allocation8 + $0x20] sm:$0xf]
    %v384 = vld [vmem:[#allocation8 + $0x24] sm:$0xf]
    %v385 = vld [vmem:[#allocation8 + $0x28] sm:$0xf]
    %v386 = vld [vmem:[#allocation8 + $0x2c] sm:$0xf]
    %v387 = vld [vmem:[#allocation8 + $0x30] sm:$0xf]
    %v388 = vld [vmem:[#allocation8 + $0x34] sm:$0xf]
    %v389 = vld [vmem:[#allocation8 + $0x38] sm:$0xf]
    %v390 = vld [vmem:[#allocation8 + $0x3c] sm:$0xf]
    %v391 = vld [vmem:[%s6] sm:$0x1]
    %v393 = vlaneseq
    %v394 = vshrl.u32 %v393, 7
    %v395 = vsub.s32 0, %v394
    %v396 = vrot.slane %v391, %v395
    %v414 = vunpack.c.l.b16 %v375
    %v415 = vunpack.c.l.b16 %v376
    %v416 = vunpack.c.l.b16 %v377
    %v417 = vunpack.c.l.b16 %v378
    %v418 = vunpack.c.l.b16 %v379
    %v419 = vunpack.c.l.b16 %v380
    %v420 = vunpack.c.l.b16 %v381
    %v421 = vunpack.c.l.b16 %v382
    %v422 = vunpack.c.l.b16 %v383
    %v423 = vunpack.c.l.b16 %v384
    %v424 = vunpack.c.l.b16 %v385
    %v425 = vunpack.c.l.b16 %v386
    %v426 = vunpack.c.l.b16 %v387
    %v427 = vunpack.c.l.b16 %v388
    %v428 = vunpack.c.l.b16 %v389
    %v429 = vunpack.c.l.b16 %v390
    %v430 = vpack.c.b16 %v415, %v414
    %v431 = vpack.c.b16 %v417, %v416
    %v432 = vpack.c.b16 %v419, %v418
    %v433 = vpack.c.b16 %v421, %v420
    %v434 = vpack.c.b16 %v423, %v422
    %v435 = vpack.c.b16 %v425, %v424
    %v436 = vpack.c.b16 %v427, %v426
    %v437 = vpack.c.b16 %v429, %v428
    %446 = vmatprep.subr.bf16.mxu0 0
    %447 = vmatpush1.bf16.msra.mxu0 %v430
    %448 = vmatprep.subr.bf16.mxu0 0
    %449 = vmatpush1.bf16.msra.mxu0 %v431
    %450 = vmatprep.subr.bf16.mxu0 0
    %451 = vmatpush1.bf16.msra.mxu0 %v432
    %452 = vmatprep.subr.bf16.mxu0 0
    %453 = vmatpush1.bf16.msra.mxu0 %v433
    %454 = vmatprep.subr.bf16.mxu0 0
    %455 = vmatpush1.bf16.msra.mxu0 %v434
    %456 = vmatprep.subr.bf16.mxu0 0
    %457 = vmatpush1.bf16.msra.mxu0 %v435
    %458 = vmatprep.subr.bf16.mxu0 0
    %459 = vmatpush1.bf16.msra.mxu0 %v436
    %460 = vmatprep.subr.bf16.mxu0 0
    %461 = vmatpush1.bf16.msra.mxu0 %v437
    %462 = vmatprep.subr.bf16.mxu0 0
    %463 = vmatpush1.bf16.msra.mxu0 0
    %464 = vmatprep.subr.bf16.mxu0 0
    %465 = vmatpush1.bf16.msra.mxu0 0
    %466 = vmatprep.subr.bf16.mxu0 0
    %467 = vmatpush1.bf16.msra.mxu0 0
    %468 = vmatprep.subr.bf16.mxu0 0
    %469 = vmatpush1.bf16.msra.mxu0 0
    %470 = vmatprep.subr.bf16.mxu0 0
    %471 = vmatpush1.bf16.msra.mxu0 0
    %472 = vmatprep.subr.bf16.mxu0 0
    %473 = vmatpush1.bf16.msra.mxu0 0
    %474 = vmatprep.subr.bf16.mxu0 0
    %475 = vmatpush1.bf16.msra.mxu0 0
    %476 = vmatprep.subr.bf16.mxu0 0
    %477 = vmatpush1.bf16.msra.mxu0 0
    %478 = vmatprep.mubr.bf16.mxu0 0
    %479 = vmatmul.mubr.bf16.gmra.mrb[0].mxu0 %v374
    %v480 = vpop.f32.mrb[0].mxu0
    %v481 = vadd.f32 %v396, %v480
    %v482 = vpop.f32.mrb[0].mxu0
    %v483 = vpop.f32.mrb[0].mxu0
    %v484 = vpop.f32.mrb[0].mxu0
    %485 = vdwg.mxu0
    %486 = vst [vmem:[#allocation10] sm:$0xff] %v481
    // Predicated region
    $region46: #{tpu_custom_call.1} parent=1 // pred_check
      _
    $region47: #{tpu_custom_call.1} parent=1 // pred_check_branch
      %488 = sbr.rel (0) target = $region49
    $region48: #{tpu_custom_call.1} parent=1 // pred_region
      %s490 = ssub.s32 128, 128
      %491 = vsyncadd [#allocation4], %s490
      %s493 = sshll.u32 [#allocation10], 4
      %s494 = int_to_ptr.vmem [resolvable:$true] %s493
      %496 = dma.vmem_to_hbm [thread:$0]  %s494, 128, %s7, [#allocation4]
    $region49: #{tpu_custom_call.1} parent=1 // pred_fallthru
      _
    // Predicated region
    $region50: #{tpu_custom_call.1} parent=1 // pred_check
      _
    $region51: #{tpu_custom_call.1} parent=1 // pred_check_branch
      %498 = sbr.rel (0) target = $region53
    $region52: #{tpu_custom_call.1} parent=1 // pred_region
      %499 = dma.done [#allocation4], 128
    $region53: #{tpu_custom_call.1} parent=1 // pred_fallthru
      _
    %500 = vsyncpa [#allocation3], 1
    %501 = vsyncpa [#allocation6], 1
    %502 = vsyncpa [#allocation9], 1
    %503 = vsyncpa [#allocation4], 1

</llo_original>
